<compile_context>
chip_gen: v6e
topology: v6e:2x2x1
jax: 0.10.0
libtpu: 0.0.40
codegen_flags: <defaults>
</compile_context>

<pallas_src>
import functools

import jax
import jax.numpy as jnp
from jax.experimental import pallas as pl
from jax.experimental.pallas import tpu as pltpu


def _round_up(x, m):
    return (x + m - 1) // m * m


# ----------------------------------------------------------------------------
# Kernel 1: fused multi-input / multi-head linear
#   out_o = act( sum_k x_k @ W_{o,k} + b_o )      for o in range(n_out)
# Tiled over M with grid pipelining; weights/bias are full-array VMEM blocks.
# ----------------------------------------------------------------------------
def _fused_linear_kernel(*refs, n_x, n_out, apply_tanh):
    x_refs = refs[:n_x]
    out_refs = refs[len(refs) - n_out:]
    idx = n_x
    for o in range(n_out):
        w_refs = refs[idx:idx + n_x]
        b_ref = refs[idx + n_x]
        idx += n_x + 1
        acc = jnp.dot(x_refs[0][...], w_refs[0][...],
                      preferred_element_type=jnp.float32)
        for k in range(1, n_x):
            acc = acc + jnp.dot(x_refs[k][...], w_refs[k][...],
                                preferred_element_type=jnp.float32)
        acc = acc + b_ref[...]
        if apply_tanh:
            acc = jnp.tanh(acc)
        out_refs[o][...] = acc


def fused_linear(xs, w_heads, b_heads, apply_tanh=False, tm_target=256):
    """xs: list of (M, K_i). w_heads: per output head, a list of (K_i, N_o)
    weights (one per input). b_heads: per output head, a bias of N_o elems.
    Returns a list of (M, N_o) float32 arrays."""
    M = xs[0].shape[0]
    if M <= tm_target:
        tm, Mp = M, M
        xs_p = list(xs)
    else:
        tm = tm_target
        Mp = _round_up(M, tm)
        xs_p = [jnp.pad(x, ((0, Mp - M), (0, 0))) for x in xs]

    n_x = len(xs_p)
    n_out = len(w_heads)

    in_specs = []
    operands = []
    for x in xs_p:
        in_specs.append(pl.BlockSpec((tm, x.shape[1]), lambda i: (i, 0)))
        operands.append(x)

    out_shapes = []
    out_specs = []
    for ws, b in zip(w_heads, b_heads):
        N = ws[0].shape[1]
        for w in ws:
            in_specs.append(pl.BlockSpec(w.shape, lambda i: (0, 0)))
            operands.append(w)
        in_specs.append(pl.BlockSpec((1, N), lambda i: (0, 0)))
        operands.append(jnp.reshape(b, (1, N)).astype(jnp.float32))
        out_shapes.append(jax.ShapeDtypeStruct((Mp, N), jnp.float32))
        out_specs.append(pl.BlockSpec((tm, N), lambda i: (i, 0)))

    kernel = functools.partial(_fused_linear_kernel, n_x=n_x, n_out=n_out,
                               apply_tanh=apply_tanh)
    result = pl.pallas_call(
        kernel,
        out_shape=tuple(out_shapes),
        grid=(Mp // tm,),
        in_specs=in_specs,
        out_specs=tuple(out_specs),
        compiler_params=pltpu.CompilerParams(dimension_semantics=("parallel",)),
    )(*operands)
    outs = list(result) if isinstance(result, (tuple, list)) else [result]
    if Mp != M:
        outs = [o[:M] for o in outs]
    return outs


# ----------------------------------------------------------------------------
# Kernel 2: fused forward+backward LSTM recurrence for one layer.
# Input gates are pre-projected (x @ W_ih + b) for all timesteps; only
# h_prev @ W_hh + gate nonlinearities remain in the sequential loop.
# PyTorch gate order: i, f, g, o.
# ----------------------------------------------------------------------------
def _bilstm_rec_kernel(gf_ref, gb_ref, whhf_ref, whhb_ref,
                       hf_ref, hb_ref, *, H, T):
    B = gf_ref.shape[1]
    whh_f = whhf_ref[...]
    whh_b = whhb_ref[...]

    def cell(gates_pre, h_prev, c_prev, whh):
        gates = gates_pre + jnp.dot(h_prev, whh,
                                    preferred_element_type=jnp.float32)
        i = jax.nn.sigmoid(gates[:, 0:H])
        f = jax.nn.sigmoid(gates[:, H:2 * H])
        g = jnp.tanh(gates[:, 2 * H:3 * H])
        o = jax.nn.sigmoid(gates[:, 3 * H:4 * H])
        c = f * c_prev + i * g
        h = o * jnp.tanh(c)
        return h, c

    def body(t, carry):
        hf, cf, hb, cb = carry
        # forward direction, time t
        hf, cf = cell(gf_ref[t], hf, cf, whh_f)
        hf_ref[t] = hf
        # backward direction, time T-1-t
        tb = T - 1 - t
        hb, cb = cell(gb_ref[tb], hb, cb, whh_b)
        hb_ref[tb] = hb
        return hf, cf, hb, cb

    z = jnp.zeros((B, H), jnp.float32)
    jax.lax.fori_loop(0, T, body, (z, z, z, z))


def bilstm_recurrence(gf, gb, whh_f, whh_b, H):
    """gf, gb: (T, B, 4H) pre-projected gates. Returns hf, hb: (T, B, H)."""
    T, B, G = gf.shape
    kernel = functools.partial(_bilstm_rec_kernel, H=H, T=T)
    return pl.pallas_call(
        kernel,
        out_shape=(jax.ShapeDtypeStruct((T, B, H), jnp.float32),
                   jax.ShapeDtypeStruct((T, B, H), jnp.float32)),
        grid=(1,),
        in_specs=[pl.BlockSpec((T, B, G), lambda i: (0, 0, 0)),
                  pl.BlockSpec((T, B, G), lambda i: (0, 0, 0)),
                  pl.BlockSpec((H, G), lambda i: (0, 0)),
                  pl.BlockSpec((H, G), lambda i: (0, 0))],
        out_specs=(pl.BlockSpec((T, B, H), lambda i: (0, 0, 0)),
                   pl.BlockSpec((T, B, H), lambda i: (0, 0, 0))),
        compiler_params=pltpu.CompilerParams(dimension_semantics=("arbitrary",)),
    )(gf, gb, whh_f, whh_b)


# ----------------------------------------------------------------------------
# Kernel 3: ATTENTION 'align' tail.  h1 = H @ W1 and q1 = q @ W2 are
# precomputed; per (b, k) only tanh / reduce / sigmoid run here.
#   mask[b,k] = sigmoid( sum_A( tanh(h1[b] + q1[b,k]) * w3 ) )
# ----------------------------------------------------------------------------
def _attn_align_kernel(h1_ref, q1_ref, w3_ref, o_ref):
    TF = h1_ref.shape[1]
    s = jnp.tanh(h1_ref[0] + q1_ref[0, 0])        # (TF, A) + (1, A)
    e = jnp.sum(s * w3_ref[...], axis=-1)         # (TF,)
    o_ref[...] = jax.nn.sigmoid(e).reshape(1, 1, 1, TF)


def attention_align(h1_bta, q1_bk1a, w3_row):
    """h1_bta: (B, T*F, A); q1_bk1a: (B, K, 1, A) -> (B, K, 1, T*F)."""
    B, TF, A = h1_bta.shape
    K = q1_bk1a.shape[1]
    return pl.pallas_call(
        _attn_align_kernel,
        out_shape=jax.ShapeDtypeStruct((B, K, 1, TF), jnp.float32),
        grid=(B, K),
        in_specs=[pl.BlockSpec((1, TF, A), lambda b, k: (b, 0, 0)),
                  pl.BlockSpec((1, 1, 1, A), lambda b, k: (b, k, 0, 0)),
                  pl.BlockSpec((1, A), lambda b, k: (0, 0))],
        out_specs=pl.BlockSpec((1, 1, 1, TF), lambda b, k: (b, k, 0, 0)),
        compiler_params=pltpu.CompilerParams(
            dimension_semantics=("parallel", "parallel")),
    )(h1_bta, q1_bk1a, w3_row)


# ----------------------------------------------------------------------------
# SS forward (Pallas version)
# ----------------------------------------------------------------------------
def ss_forward(params, config, mix_feas, hidden_outputs, targets):
    del targets  # only used to build `aim_list` in PyTorch; no effect on output
    B, T, F = mix_feas.shape
    K = hidden_outputs.shape[1]
    H = config["HIDDEN_UNITS"]
    E = config["EMBEDDING_SIZE"]
    A = params["att_w1_t"].shape[1]

    # ---- MIX_SPEECH: 4-layer bidirectional LSTM (time-major) ----
    x_tb = jnp.transpose(mix_feas, (1, 0, 2)).reshape(T * B, F)
    xs = [x_tb]
    hf = hb = None
    for layer in params["lstm"]:
        fwd, bwd = layer["fwd"], layer["bwd"]
        # input projection for all timesteps, both directions, one call
        gf_flat, gb_flat = fused_linear(
            xs, w_heads=[fwd["w_ih"], bwd["w_ih"]],
            b_heads=[fwd["b"], bwd["b"]], apply_tanh=False)
        gf = gf_flat.reshape(T, B, 4 * H)
        gb = gb_flat.reshape(T, B, 4 * H)
        # fused fwd/bwd recurrence
        hf, hb = bilstm_recurrence(gf, gb, fwd["w_hh"], bwd["w_hh"], H)
        xs = [hf.reshape(T * B, H), hb.reshape(T * B, H)]

    # ---- Linear(2H -> F*E) + tanh (batch-major rows; concat fused into matmul)
    hf_bt = jnp.transpose(hf, (1, 0, 2)).reshape(B * T, H)
    hb_bt = jnp.transpose(hb, (1, 0, 2)).reshape(B * T, H)
    (lin_out,) = fused_linear(
        [hf_bt, hb_bt],
        w_heads=[[params["lin_w_t_f"], params["lin_w_t_b"]]],
        b_heads=[params["lin_b"]], apply_tanh=True)           # (B*T, F*E)

    # ---- ATTENTION 'align': H @ W1 computed once per batch element ----
    mix_hidden_flat = lin_out.reshape(B * T * F, E)
    (h1_flat,) = fused_linear([mix_hidden_flat], [[params["att_w1_t"]]],
                              [jnp.zeros((A,), jnp.float32)], apply_tanh=False)
    h1 = h1_flat.reshape(B, T * F, A)
    (q1_flat,) = fused_linear([hidden_outputs.reshape(B * K, -1)],
                              [[params["att_w2_t"]]],
                              [jnp.zeros((A,), jnp.float32)], apply_tanh=False)
    q1 = q1_flat.reshape(B, K, 1, A)
    mask = attention_align(h1, q1, params["att_w3_row"])      # (B, K, 1, T*F)
    return mask.reshape(B * K, T, F)


# ----------------------------------------------------------------------------
# Pure-JAX reference (same math) for a correctness check
# ----------------------------------------------------------------------------
def _lstm_dir_ref(x_tbd, w_ih, w_hh, b, H):
    B = x_tbd.shape[1]

    def step(carry, x_t):
        h, c = carry
        gates = x_t @ w_ih + h @ w_hh + b[0]
        i = jax.nn.sigmoid(gates[:, :H])
        f = jax.nn.sigmoid(gates[:, H:2 * H])
        g = jnp.tanh(gates[:, 2 * H:3 * H])
        o = jax.nn.sigmoid(gates[:, 3 * H:])
        c = f * c + i * g
        h = o * jnp.tanh(c)
        return (h, c), h

    init = (jnp.zeros((B, H), jnp.float32), jnp.zeros((B, H), jnp.float32))
    _, hs = jax.lax.scan(step, init, x_tbd)
    return hs


def ss_forward_ref(params, config, mix_feas, hidden_outputs):
    B, T, F = mix_feas.shape
    K = hidden_outputs.shape[1]
    H = config["HIDDEN_UNITS"]
    E = config["EMBEDDING_SIZE"]
    x = jnp.transpose(mix_feas, (1, 0, 2))
    for layer in params["lstm"]:
        wih_f = jnp.concatenate(layer["fwd"]["w_ih"], axis=0)
        wih_b = jnp.concatenate(layer["bwd"]["w_ih"], axis=0)
        hf = _lstm_dir_ref(x, wih_f, layer["fwd"]["w_hh"], layer["fwd"]["b"], H)
        hb = _lstm_dir_ref(x[::-1], wih_b, layer["bwd"]["w_hh"],
                           layer["bwd"]["b"], H)[::-1]
        x = jnp.concatenate([hf, hb], axis=-1)
    lstm_out = jnp.transpose(x, (1, 0, 2)).reshape(B * T, 2 * H)
    lin_w_t = jnp.concatenate([params["lin_w_t_f"], params["lin_w_t_b"]], axis=0)
    hid = jnp.tanh(lstm_out @ lin_w_t + params["lin_b"]).reshape(B, T * F, E)
    h1 = hid @ params["att_w1_t"]                               # (B, T*F, A)
    q1 = hidden_outputs.reshape(B * K, -1) @ params["att_w2_t"]  # (B*K, A)
    h1 = jnp.repeat(h1, K, axis=0)                              # (B*K, T*F, A)
    s = jnp.tanh(h1 + q1[:, None, :])
    e = jnp.sum(s * params["att_w3_row"][0], axis=-1)           # (B*K, T*F)
    return jax.nn.sigmoid(e).reshape(B * K, T, F)


# ----------------------------------------------------------------------------
# Deterministic parameter init (synthetic weights, PyTorch shapes, stored
# transposed; W_ih of layers 1..3 and the final Linear weight are stored as
# split fwd/bwd halves so no concat is ever materialized in the hot path)
# ----------------------------------------------------------------------------
def init_params(key, F, H, E, S, A):
    keys = iter(jax.random.split(key, 64))

    def w(shape, scale=0.1):
        return (scale * jax.random.normal(next(keys), shape)).astype(jnp.float32)

    lstm = []
    for layer_idx in range(4):
        n_parts = 1 if layer_idx == 0 else 2
        part_dim = F if layer_idx == 0 else H
        layer = {}
        for d in ("fwd", "bwd"):
            layer[d] = {
                "w_ih": [w((part_dim, 4 * H)) for _ in range(n_parts)],  # W_ih^T
                "w_hh": w((H, 4 * H)),                                   # W_hh^T
                "b": w((1, 4 * H)),                                      # b_ih+b_hh
            }
        lstm.append(layer)

    return {
        "lstm": lstm,
        "lin_w_t_f": w((H, F * E)),          # Linear(2H, F*E) weight^T, fwd half
        "lin_w_t_b": w((H, F * E)),          # Linear(2H, F*E) weight^T, bwd half
        "lin_b": w((F * E,)),
        "att_w1_t": w((E, A)),               # Linear_1 weight^T
        "att_w2_t": w((S, A)),               # Linear_2 weight^T
        "att_w3_row": w((1, A)),             # Linear_3 weight (row)
    }


if __name__ == "__main__":
    # Small shapes consistent with the module
    B, K, T, F = 2, 3, 8, 16          # batch, top_k_max, mix_speech_len, speech_fre
    H, E, S, A = 16, 8, 16, 16        # HIDDEN_UNITS, EMBEDDING_SIZE, SPK_EMB_SIZE, ATT_SIZE
    config = {"HIDDEN_UNITS": H, "EMBEDDING_SIZE": E,
              "speech_cnn_net": False, "is_SelfTune": False}

    key = jax.random.PRNGKey(0)
    k1, k2, k3 = jax.random.split(key, 3)
    mix_feas = jax.random.normal(k1, (B, T, F), jnp.float32)
    hidden_outputs = jax.random.normal(k2, (B, K, S), jnp.float32)
    targets = jax.random.randint(k3, (K, B), 0, 10)   # unused beyond aim_list

    params = init_params(jax.random.PRNGKey(42), F, H, E, S, A)

    out = ss_forward(params, config, mix_feas, hidden_outputs, targets)
    out = jax.block_until_ready(out)

    ref = ss_forward_ref(params, config, mix_feas, hidden_outputs)
    assert out.shape == (B * K, T, F), out.shape
    assert jnp.allclose(out, ref, atol=2e-5, rtol=2e-5), \
        float(jnp.max(jnp.abs(out - ref)))
    print("KERNEL_OK")
</pallas_src>

<mosaic_0001>
module attributes {stable_mosaic.version = 11 : i64} {
  func.func @_fused_linear_kernel(%arg0: i32, %arg1: memref<16x16xf32, #tpu.memory_space<vmem>>, %arg2: memref<16x64xf32, #tpu.memory_space<vmem>>, %arg3: memref<1x64xf32, #tpu.memory_space<vmem>>, %arg4: memref<16x64xf32, #tpu.memory_space<vmem>>, %arg5: memref<1x64xf32, #tpu.memory_space<vmem>>, %arg6: memref<16x64xf32, #tpu.memory_space<vmem>>, %arg7: memref<16x64xf32, #tpu.memory_space<vmem>>) attributes {dimension_semantics = [#tpu.dimension_semantics<parallel>], iteration_bounds = array<i64: 1>, scalar_prefetch = 0 : i64, scratch_operands = 0 : i64, tpu.core_type = #tpu.core_type<tc>, window_params = [{transform_indices = @transform_0, window_bounds = array<i64: 16, 16>}, {pipeline_mode = #tpu.pipeline_mode<synchronous>, transform_indices = @transform_1, window_bounds = array<i64: 16, 64>}, {pipeline_mode = #tpu.pipeline_mode<synchronous>, transform_indices = @transform_2, window_bounds = array<i64: 1, 64>}, {pipeline_mode = #tpu.pipeline_mode<synchronous>, transform_indices = @transform_3, window_bounds = array<i64: 16, 64>}, {pipeline_mode = #tpu.pipeline_mode<synchronous>, transform_indices = @transform_4, window_bounds = array<i64: 1, 64>}, {transform_indices = @transform_5, window_bounds = array<i64: 16, 64>}, {transform_indices = @transform_6, window_bounds = array<i64: 16, 64>}]} {
    %c0 = arith.constant 0 : index
    %c0_0 = arith.constant 0 : index
    %0 = vector.load %arg1[%c0, %c0_0] : memref<16x16xf32, #tpu.memory_space<vmem>>, vector<16x16xf32>
    %c0_1 = arith.constant 0 : index
    %c0_2 = arith.constant 0 : index
    %1 = vector.load %arg2[%c0_1, %c0_2] : memref<16x64xf32, #tpu.memory_space<vmem>>, vector<16x64xf32>
    %cst = arith.constant dense<0.000000e+00> : vector<16x64xf32>
    %2 = tpu.matmul %0, %1, %cst {dimension_numbers = #tpu.dot_dimension_numbers<[1], [0], [0], [1], [0, 0, 1, 1], [], []>} : vector<16x16xf32>, vector<16x64xf32>, vector<16x64xf32> -> vector<16x64xf32>
    %c0_3 = arith.constant 0 : index
    %c0_4 = arith.constant 0 : index
    %3 = vector.load %arg3[%c0_3, %c0_4] : memref<1x64xf32, #tpu.memory_space<vmem>>, vector<1x64xf32>
    %4 = vector.broadcast %3 : vector<1x64xf32> to vector<16x64xf32>
    %5 = arith.addf %2, %4 : vector<16x64xf32>
    %c0_5 = arith.constant 0 : index
    %c0_6 = arith.constant 0 : index
    %6 = vector.load %arg6[%c0_5, %c0_6] : memref<16x64xf32, #tpu.memory_space<vmem>>, vector<16x64xf32>
    tpu.vector_store %arg6[%c0_5, %c0_6], %5 {strides = array<i32>} : memref<16x64xf32, #tpu.memory_space<vmem>>, vector<16x64xf32>,
    %c0_7 = arith.constant 0 : index
    %c0_8 = arith.constant 0 : index
    %7 = vector.load %arg1[%c0_7, %c0_8] : memref<16x16xf32, #tpu.memory_space<vmem>>, vector<16x16xf32>
    %c0_9 = arith.constant 0 : index
    %c0_10 = arith.constant 0 : index
    %8 = vector.load %arg4[%c0_9, %c0_10] : memref<16x64xf32, #tpu.memory_space<vmem>>, vector<16x64xf32>
    %cst_11 = arith.constant dense<0.000000e+00> : vector<16x64xf32>
    %9 = tpu.matmul %7, %8, %cst_11 {dimension_numbers = #tpu.dot_dimension_numbers<[1], [0], [0], [1], [0, 0, 1, 1], [], []>} : vector<16x16xf32>, vector<16x64xf32>, vector<16x64xf32> -> vector<16x64xf32>
    %c0_12 = arith.constant 0 : index
    %c0_13 = arith.constant 0 : index
    %10 = vector.load %arg5[%c0_12, %c0_13] : memref<1x64xf32, #tpu.memory_space<vmem>>, vector<1x64xf32>
    %11 = vector.broadcast %10 : vector<1x64xf32> to vector<16x64xf32>
    %12 = arith.addf %9, %11 : vector<16x64xf32>
    %c0_14 = arith.constant 0 : index
    %c0_15 = arith.constant 0 : index
    %13 = vector.load %arg7[%c0_14, %c0_15] : memref<16x64xf32, #tpu.memory_space<vmem>>, vector<16x64xf32>
    tpu.vector_store %arg7[%c0_14, %c0_15], %12 {strides = array<i32>} : memref<16x64xf32, #tpu.memory_space<vmem>>, vector<16x64xf32>,
    return
  }
  func.func @transform_0(%arg0: i32) -> (i32, i32) {
    %c0_i32 = arith.constant 0 : i32
    %c0_i32_0 = arith.constant 0 : i32
    return %arg0, %c0_i32 : i32, i32
  }
  func.func @transform_1(%arg0: i32) -> (i32, i32) {
    %c0_i32 = arith.constant 0 : i32
    %c0_i32_0 = arith.constant 0 : i32
    %c0_i32_1 = arith.constant 0 : i32
    return %c0_i32, %c0_i32_0 : i32, i32
  }
  func.func @transform_2(%arg0: i32) -> (i32, i32) {
    %c0_i32 = arith.constant 0 : i32
    %c0_i32_0 = arith.constant 0 : i32
    %c0_i32_1 = arith.constant 0 : i32
    return %c0_i32, %c0_i32_0 : i32, i32
  }
  func.func @transform_3(%arg0: i32) -> (i32, i32) {
    %c0_i32 = arith.constant 0 : i32
    %c0_i32_0 = arith.constant 0 : i32
    %c0_i32_1 = arith.constant 0 : i32
    return %c0_i32, %c0_i32_0 : i32, i32
  }
  func.func @transform_4(%arg0: i32) -> (i32, i32) {
    %c0_i32 = arith.constant 0 : i32
    %c0_i32_0 = arith.constant 0 : i32
    %c0_i32_1 = arith.constant 0 : i32
    return %c0_i32, %c0_i32_0 : i32, i32
  }
  func.func @transform_5(%arg0: i32) -> (i32, i32) {
    %c0_i32 = arith.constant 0 : i32
    %c0_i32_0 = arith.constant 0 : i32
    return %arg0, %c0_i32 : i32, i32
  }
  func.func @transform_6(%arg0: i32) -> (i32, i32) {
    %c0_i32 = arith.constant 0 : i32
    %c0_i32_0 = arith.constant 0 : i32
    return %arg0, %c0_i32 : i32, i32
  }
}

</mosaic_0001>

<llo_original>
// kernel: tpu_custom_call.1
$region0: #{tpu_custom_call.1}
  #allocation0 [shape = 'u32[]', space=smem, size = 0x4, offset = 0x4, fixed_abs, tag = 'smem constant byte address 0x4 - core index']
  #allocation1 [shape = 'u32[144,128]{1,0:T(1,128)}', space=vmem, size = 0x12000, scoped, tag = 'internal scratch']
  %s0 = inlined_call_operand.hbm [shape: f32[16,16], index: 0, kind: input, shape index: {}]
  %s1 = inlined_call_operand.hbm [shape: f32[16,64], index: 1, kind: input, shape index: {}]
  %s2 = inlined_call_operand.vmem [shape: f32[1,64], index: 2, kind: input, shape index: {}]
  %s3 = inlined_call_operand.hbm [shape: f32[16,64], index: 3, kind: input, shape index: {}]
  %s4 = inlined_call_operand.vmem [shape: f32[1,64], index: 4, kind: input, shape index: {}]
  %s5 = inlined_call_operand.hbm [shape: f32[16,64], index: 5, kind: output, shape index: {0}]
  %s6 = inlined_call_operand.hbm [shape: f32[16,64], index: 6, kind: output, shape index: {1}]
  %7 = xla_tuple %s5, %s6
  %s8 = sld [smem:[#allocation0]]
  $region50: #{tpu_custom_call.1} parent=0
    _
  %s10 = ssub.s32 1, %s8
  %s11 = scalar_select 0, %s10, %s8
  $region1: #{tpu_custom_call.1} parent=0
    #allocation2 [shape = 'u8[8192]{0}', space=vmem, size = 0x2000, scoped, tag = 'input window, operand 0, single buffered']
    #allocation3 [shape = 's32[1]{0}', space=sflag, size = 0x4, scoped, tag = 'scoped memory for tpu_custom_call.1']
    #allocation4 [shape = 's32[1]{0}', space=sflag, size = 0x4, scoped, tag = 'scoped memory for tpu_custom_call.1']
    #allocation5 [shape = 'u8[8192]{0}', space=vmem, size = 0x2000, scoped, tag = 'input window, operand 1, single buffered']
    #allocation6 [shape = 's32[1]{0}', space=sflag, size = 0x4, scoped, tag = 'scoped memory for tpu_custom_call.1']
    #allocation7 [shape = 'u8[8192]{0}', space=vmem, size = 0x2000, scoped, tag = 'input window, operand 3, single buffered']
    #allocation8 [shape = 'u8[8192]{0}', space=vmem, size = 0x2000, scoped, tag = 'output window, operand 0, single buffered']
    #allocation9 [shape = 'u8[8192]{0}', space=vmem, size = 0x2000, scoped, tag = 'output window, operand 1, single buffered']
    #allocation10 [shape = 's32[1]{0}', space=sflag, size = 0x4, scoped, tag = 'scoped memory for tpu_custom_call.1']
    %12 = vsyncpa [#allocation3], 0
    %13 = vsyncpa [#allocation6], 0
    %14 = vsyncpa [#allocation4], 0
    %15 = vsyncpa [#allocation10], 0
    // Predicated region
    $region2: #{tpu_custom_call.1} parent=1 // pred_check
      _
    $region3: #{tpu_custom_call.1} parent=1 // pred_check_branch
      %17 = sbr.rel (0) target = $region5
    $region4: #{tpu_custom_call.1} parent=1 // pred_region
      %s19 = ssub.s32 256, 256
      %20 = vsyncadd [#allocation3], %s19
      %s21 = sshll.u32 [#allocation2], 4
      %s22 = int_to_ptr.vmem [resolvable:$true] %s21
      %27 = dma.hbm_to_vmem [thread:$0]  %s0, 256, %s22, [#allocation3], 128, 128, 8
    $region5: #{tpu_custom_call.1} parent=1 // pred_fallthru
      _
    // Predicated region
    $region6: #{tpu_custom_call.1} parent=1 // pred_check
      _
    $region7: #{tpu_custom_call.1} parent=1 // pred_check_branch
      %29 = sbr.rel (0) target = $region9
    $region8: #{tpu_custom_call.1} parent=1 // pred_region
      %s31 = ssub.s32 256, 256
      %32 = vsyncadd [#allocation6], %s31
      %s33 = sshll.u32 [#allocation5], 4
      %s34 = int_to_ptr.vmem [resolvable:$true] %s33
      %39 = dma.hbm_to_vmem [thread:$0]  %s1, 256, %s34, [#allocation6], 128, 128, 8
    $region9: #{tpu_custom_call.1} parent=1 // pred_fallthru
      _
    // Predicated region
    $region10: #{tpu_custom_call.1} parent=1 // pred_check
      _
    $region11: #{tpu_custom_call.1} parent=1 // pred_check_branch
      %41 = sbr.rel (0) target = $region13
    $region12: #{tpu_custom_call.1} parent=1 // pred_region
      _
    $region13: #{tpu_custom_call.1} parent=1 // pred_fallthru
      _
    // Predicated region
    $region14: #{tpu_custom_call.1} parent=1 // pred_check
      _
    $region15: #{tpu_custom_call.1} parent=1 // pred_check_branch
      %43 = sbr.rel (0) target = $region17
    $region16: #{tpu_custom_call.1} parent=1 // pred_region
      %s45 = ssub.s32 256, 256
      %46 = vsyncadd [#allocation6], %s45
      %s47 = sshll.u32 [#allocation7], 4
      %s48 = int_to_ptr.vmem [resolvable:$true] %s47
      %53 = dma.hbm_to_vmem [thread:$0]  %s3, 256, %s48, [#allocation6], 128, 128, 8
    $region17: #{tpu_custom_call.1} parent=1 // pred_fallthru
      _
    // Predicated region
    $region18: #{tpu_custom_call.1} parent=1 // pred_check
      _
    $region19: #{tpu_custom_call.1} parent=1 // pred_check_branch
      %55 = sbr.rel (0) target = $region21
    $region20: #{tpu_custom_call.1} parent=1 // pred_region
      _
    $region21: #{tpu_custom_call.1} parent=1 // pred_fallthru
      _
    // Predicated region
    $region22: #{tpu_custom_call.1} parent=1 // pred_check
      _
    $region23: #{tpu_custom_call.1} parent=1 // pred_check_branch
      %57 = sbr.rel (0) target = $region25
    $region24: #{tpu_custom_call.1} parent=1 // pred_region
      %58 = dma.done [#allocation3], 256
    $region25: #{tpu_custom_call.1} parent=1 // pred_fallthru
      _
    // Predicated region
    $region26: #{tpu_custom_call.1} parent=1 // pred_check
      _
    $region27: #{tpu_custom_call.1} parent=1 // pred_check_branch
      %60 = sbr.rel (0) target = $region29
    $region28: #{tpu_custom_call.1} parent=1 // pred_region
      %61 = dma.done [#allocation6], 256
    $region29: #{tpu_custom_call.1} parent=1 // pred_fallthru
      _
    // Predicated region
    $region30: #{tpu_custom_call.1} parent=1 // pred_check
      _
    $region31: #{tpu_custom_call.1} parent=1 // pred_check_branch
      %63 = sbr.rel (0) target = $region33
    $region32: #{tpu_custom_call.1} parent=1 // pred_region
      %64 = dma.done [#allocation6], 256
    $region33: #{tpu_custom_call.1} parent=1 // pred_fallthru
      _
    %v65 = vld [vmem:[#allocation2] sm:$0xff]
    %v66 = vld [vmem:[#allocation2 + $0x8] sm:$0xff]
    %v67 = vld [vmem:[#allocation5] sm:$0xff]
    %v68 = vld [vmem:[#allocation5 + $0x8] sm:$0xff]
    %v69 = vld [vmem:[%s2] sm:$0x1]
    %v71 = vlaneseq
    %v72 = vshrl.u32 %v71, 7
    %v73 = vsub.s32 0, %v72
    %v74 = vrot.slane %v69, %v73
    %vm76 = vcmask 130048
    %v78 = vsel %vm76, %v65, 0
    %v81 = vsel %vm76, %v66, 0
    %83 = vmatprep.subr.mxu0 0.0
    %84 = vmatpush1.msra.mxu0 0.0
    %85 = vmatprep.subr.mxu0 0.0
    %86 = vmatpush1.msra.mxu0 0.0
    %87 = vmatprep.subr.mxu0 0.0
    %88 = vmatpush1.msra.mxu0 0.0
    %89 = vmatprep.subr.mxu0 0.0
    %90 = vmatpush1.msra.mxu0 0.0
    %91 = vmatprep.subr.mxu0 0.0
    %92 = vmatpush1.msra.mxu0 0.0
    %93 = vmatprep.subr.mxu0 0.0
    %94 = vmatpush1.msra.mxu0 0.0
    %95 = vmatprep.subr.mxu0 0.0
    %96 = vmatpush1.msra.mxu0 0.0
    %97 = vmatprep.subr.mxu0 0.0
    %98 = vmatpush1.msra.mxu0 0.0
    %99 = vmatprep.subr.mxu0 0.0
    %100 = vmatpush1.msra.mxu0 0.0
    %101 = vmatprep.subr.mxu0 0.0
    %102 = vmatpush1.msra.mxu0 0.0
    %103 = vmatprep.subr.mxu0 0.0
    %104 = vmatpush1.msra.mxu0 0.0
    %105 = vmatprep.subr.mxu0 0.0
    %106 = vmatpush1.msra.mxu0 0.0
    %107 = vmatprep.subr.mxu0 0.0
    %108 = vmatpush1.msra.mxu0 0.0
    %109 = vmatprep.subr.mxu0 0.0
    %110 = vmatpush1.msra.mxu0 0.0
    %111 = vmatprep.subr.mxu0 0.0
    %112 = vmatpush1.msra.mxu0 %v68
    %113 = vmatprep.subr.mxu0 0.0
    %114 = vmatpush1.msra.mxu0 %v67
    %115 = vmatprep.subr.mxu0 0.0
    %116 = vmatpush2.msra.mxu0 0.0
    %117 = vmatprep.subr.mxu0 0.0
    %118 = vmatpush2.msra.mxu0 0.0
    %119 = vmatprep.subr.mxu0 0.0
    %120 = vmatpush2.msra.mxu0 0.0
    %121 = vmatprep.subr.mxu0 0.0
    %122 = vmatpush2.msra.mxu0 0.0
    %123 = vmatprep.subr.mxu0 0.0
    %124 = vmatpush2.msra.mxu0 0.0
    %125 = vmatprep.subr.mxu0 0.0
    %126 = vmatpush2.msra.mxu0 0.0
    %127 = vmatprep.subr.mxu0 0.0
    %128 = vmatpush2.msra.mxu0 0.0
    %129 = vmatprep.subr.mxu0 0.0
    %130 = vmatpush2.msra.mxu0 0.0
    %131 = vmatprep.subr.mxu0 0.0
    %132 = vmatpush2.msra.mxu0 0.0
    %133 = vmatprep.subr.mxu0 0.0
    %134 = vmatpush2.msra.mxu0 0.0
    %135 = vmatprep.subr.mxu0 0.0
    %136 = vmatpush2.msra.mxu0 0.0
    %137 = vmatprep.subr.mxu0 0.0
    %138 = vmatpush2.msra.mxu0 0.0
    %139 = vmatprep.subr.mxu0 0.0
    %140 = vmatpush2.msra.mxu0 0.0
    %141 = vmatprep.subr.mxu0 0.0
    %142 = vmatpush2.msra.mxu0 0.0
    %143 = vmatprep.subr.mxu0 0.0
    %144 = vmatpush2.msra.mxu0 0.0
    %145 = vmatprep.subr.mxu0 0.0
    %146 = vmatpush2.msra.mxu0 0.0
    %147 = vmatprep.mubr.f32.mxu0 0.0
    %148 = vmatmul.mubr.f32.gmra.mxu0 %v78
    %v149 = vpop.f32.mrf.mxu0
    %v150 = vadd.f32 %v74, %v149
    %v151 = vpop.f32.mrf.mxu0
    %152 = vmatprep.mubr.f32.mxu0 0.0
    %153 = vmatmul.mubr.f32.gmra.mxu0 %v81
    %v154 = vpop.f32.mrf.mxu0
    %v155 = vadd.f32 %v74, %v154
    %v156 = vpop.f32.mrf.mxu0
    %157 = vdwg.mxu0
    %vm158 = vcmask 523264
    %159 = vst.msk [vmem:[#allocation8] sm:$0xff] %vm158, %v150
    %160 = vst.msk [vmem:[#allocation8 + $0x8] sm:$0xff] %vm158, %v155
    %v161 = vld [vmem:[#allocation2] sm:$0xff]
    %v162 = vld [vmem:[#allocation2 + $0x8] sm:$0xff]
    %v163 = vld [vmem:[#allocation7] sm:$0xff]
    %v164 = vld [vmem:[#allocation7 + $0x8] sm:$0xff]
    %v165 = vld [vmem:[%s4] sm:$0x1]
    %v167 = vlaneseq
    %v168 = vshrl.u32 %v167, 7
    %v169 = vsub.s32 0, %v168
    %v170 = vrot.slane %v165, %v169
    %v173 = vsel %vm76, %v161, 0
    %v176 = vsel %vm76, %v162, 0
    %178 = vmatprep.subr.mxu0 0.0
    %179 = vmatpush1.msra.mxu0 0.0
    %180 = vmatprep.subr.mxu0 0.0
    %181 = vmatpush1.msra.mxu0 0.0
    %182 = vmatprep.subr.mxu0 0.0
    %183 = vmatpush1.msra.mxu0 0.0
    %184 = vmatprep.subr.mxu0 0.0
    %185 = vmatpush1.msra.mxu0 0.0
    %186 = vmatprep.subr.mxu0 0.0
    %187 = vmatpush1.msra.mxu0 0.0
    %188 = vmatprep.subr.mxu0 0.0
    %189 = vmatpush1.msra.mxu0 0.0
    %190 = vmatprep.subr.mxu0 0.0
    %191 = vmatpush1.msra.mxu0 0.0
    %192 = vmatprep.subr.mxu0 0.0
    %193 = vmatpush1.msra.mxu0 0.0
    %194 = vmatprep.subr.mxu0 0.0
    %195 = vmatpush1.msra.mxu0 0.0
    %196 = vmatprep.subr.mxu0 0.0
    %197 = vmatpush1.msra.mxu0 0.0
    %198 = vmatprep.subr.mxu0 0.0
    %199 = vmatpush1.msra.mxu0 0.0
    %200 = vmatprep.subr.mxu0 0.0
    %201 = vmatpush1.msra.mxu0 0.0
    %202 = vmatprep.subr.mxu0 0.0
    %203 = vmatpush1.msra.mxu0 0.0
    %204 = vmatprep.subr.mxu0 0.0
    %205 = vmatpush1.msra.mxu0 0.0
    %206 = vmatprep.subr.mxu0 0.0
    %207 = vmatpush1.msra.mxu0 %v164
    %208 = vmatprep.subr.mxu0 0.0
    %209 = vmatpush1.msra.mxu0 %v163
    %210 = vmatprep.subr.mxu0 0.0
    %211 = vmatpush2.msra.mxu0 0.0
    %212 = vmatprep.subr.mxu0 0.0
    %213 = vmatpush2.msra.mxu0 0.0
    %214 = vmatprep.subr.mxu0 0.0
    %215 = vmatpush2.msra.mxu0 0.0
    %216 = vmatprep.subr.mxu0 0.0
    %217 = vmatpush2.msra.mxu0 0.0
    %218 = vmatprep.subr.mxu0 0.0
    %219 = vmatpush2.msra.mxu0 0.0
    %220 = vmatprep.subr.mxu0 0.0
    %221 = vmatpush2.msra.mxu0 0.0
    %222 = vmatprep.subr.mxu0 0.0
    %223 = vmatpush2.msra.mxu0 0.0
    %224 = vmatprep.subr.mxu0 0.0
    %225 = vmatpush2.msra.mxu0 0.0
    %226 = vmatprep.subr.mxu0 0.0
    %227 = vmatpush2.msra.mxu0 0.0
    %228 = vmatprep.subr.mxu0 0.0
    %229 = vmatpush2.msra.mxu0 0.0
    %230 = vmatprep.subr.mxu0 0.0
    %231 = vmatpush2.msra.mxu0 0.0
    %232 = vmatprep.subr.mxu0 0.0
    %233 = vmatpush2.msra.mxu0 0.0
    %234 = vmatprep.subr.mxu0 0.0
    %235 = vmatpush2.msra.mxu0 0.0
    %236 = vmatprep.subr.mxu0 0.0
    %237 = vmatpush2.msra.mxu0 0.0
    %238 = vmatprep.subr.mxu0 0.0
    %239 = vmatpush2.msra.mxu0 0.0
    %240 = vmatprep.subr.mxu0 0.0
    %241 = vmatpush2.msra.mxu0 0.0
    %242 = vmatprep.mubr.f32.mxu0 0.0
    %243 = vmatmul.mubr.f32.gmra.mxu0 %v173
    %v244 = vpop.f32.mrf.mxu0
    %v245 = vadd.f32 %v170, %v244
    %v246 = vpop.f32.mrf.mxu0
    %247 = vmatprep.mubr.f32.mxu0 0.0
    %248 = vmatmul.mubr.f32.gmra.mxu0 %v176
    %v249 = vpop.f32.mrf.mxu0
    %v250 = vadd.f32 %v170, %v249
    %v251 = vpop.f32.mrf.mxu0
    %252 = vdwg.mxu0
    %253 = vst.msk [vmem:[#allocation9] sm:$0xff] %vm158, %v245
    %254 = vst.msk [vmem:[#allocation9 + $0x8] sm:$0xff] %vm158, %v250
    // Predicated region
    $region34: #{tpu_custom_call.1} parent=1 // pred_check
      _
    $region35: #{tpu_custom_call.1} parent=1 // pred_check_branch
      %256 = sbr.rel (0) target = $region37
    $region36: #{tpu_custom_call.1} parent=1 // pred_region
      %s258 = ssub.s32 256, 256
      %259 = vsyncadd [#allocation4], %s258
      %s260 = sshll.u32 [#allocation8], 4
      %s261 = int_to_ptr.vmem [resolvable:$true] %s260
      %266 = dma.vmem_to_hbm [thread:$0]  %s261, 256, %s5, [#allocation4], 128, 128, 8
    $region37: #{tpu_custom_call.1} parent=1 // pred_fallthru
      _
    // Predicated region
    $region38: #{tpu_custom_call.1} parent=1 // pred_check
      _
    $region39: #{tpu_custom_call.1} parent=1 // pred_check_branch
      %268 = sbr.rel (0) target = $region41
    $region40: #{tpu_custom_call.1} parent=1 // pred_region
      %s270 = ssub.s32 256, 256
      %271 = vsyncadd [#allocation10], %s270
      %s272 = sshll.u32 [#allocation9], 4
      %s273 = int_to_ptr.vmem [resolvable:$true] %s272
      %278 = dma.vmem_to_hbm [thread:$0]  %s273, 256, %s6, [#allocation10], 128, 128, 8
    $region41: #{tpu_custom_call.1} parent=1 // pred_fallthru
      _
    // Predicated region
    $region42: #{tpu_custom_call.1} parent=1 // pred_check
      _
    $region43: #{tpu_custom_call.1} parent=1 // pred_check_branch
      %280 = sbr.rel (0) target = $region45
    $region44: #{tpu_custom_call.1} parent=1 // pred_region
      %281 = dma.done [#allocation4], 256
    $region45: #{tpu_custom_call.1} parent=1 // pred_fallthru
      _
    // Predicated region
    $region46: #{tpu_custom_call.1} parent=1 // pred_check
      _
    $region47: #{tpu_custom_call.1} parent=1 // pred_check_branch
      %283 = sbr.rel (0) target = $region49
    $region48: #{tpu_custom_call.1} parent=1 // pred_region
      %284 = dma.done [#allocation10], 256
    $region49: #{tpu_custom_call.1} parent=1 // pred_fallthru
      _
    %285 = vsyncpa [#allocation3], 1
    %286 = vsyncpa [#allocation6], 1
    %287 = vsyncpa [#allocation4], 1
    %288 = vsyncpa [#allocation10], 1

</llo_original>
